<compile_context>
chip_gen: v5e
topology: v5e:2x2
jax: 0.10.0
libtpu: 0.0.40
codegen_flags: <defaults>
</compile_context>

<pallas_src>
import jax
import jax.numpy as jnp
from jax.experimental import pallas as pl
from jax.experimental.pallas import tpu as pltpu


def _toy_mlp_kernel(x_ref, w1_ref, b1_ref, w2_ref, b2_ref, out_ref):
    """Fused: out = relu(x @ W1 + b1) @ W2 + b2 (all tiles resident in VMEM)."""
    x = x_ref[...]
    h = jnp.dot(x, w1_ref[...], preferred_element_type=jnp.float32) + b1_ref[...]
    h = jnp.maximum(h, 0.0)                       # ReLU on the VPU
    y = jnp.dot(h, w2_ref[...], preferred_element_type=jnp.float32) + b2_ref[...]
    out_ref[...] = y.astype(out_ref.dtype)


def _mlp_single_block(x, w1, b1, w2, b2):
    """No-grid path: whole arrays as single VMEM blocks, zero pipeline steps."""
    M, _ = x.shape
    f_out = w2.shape[1]
    vmem_spec = pl.BlockSpec(memory_space=pltpu.MemorySpace.VMEM)
    return pl.pallas_call(
        _toy_mlp_kernel,
        out_shape=jax.ShapeDtypeStruct((M, f_out), x.dtype),
        in_specs=[vmem_spec] * 5,
        out_specs=vmem_spec,
    )(x, w1, b1, w2, b2)


def _mlp_gridded(x, w1, b1, w2, b2, *, tm=2048):
    """Batched path: grid over row tiles; natural-width output; partial last
    block (no row padding, no output padding, no post-slice)."""
    M, f_in = x.shape
    hidden = w1.shape[1]
    f_out = w2.shape[1]

    # Balance tiles across v7x's 2 TensorCores: make the tile count even and
    # re-derive tm (multiple of 8).  Harmless on 1-TC chips (v5e/v6e).
    n_tiles = pl.cdiv(M, tm)
    if n_tiles > 1:
        n_tiles = 2 * pl.cdiv(n_tiles, 2)
        tm = max(8, ((pl.cdiv(M, n_tiles) + 7) // 8) * 8)
    grid = (pl.cdiv(M, tm),)

    return pl.pallas_call(
        _toy_mlp_kernel,
        out_shape=jax.ShapeDtypeStruct((M, f_out), x.dtype),
        grid=grid,
        in_specs=[
            # Last block may be partial: Pallas pads the OOB read; rows are
            # independent so garbage rows never reach valid output.
            pl.BlockSpec((tm, f_in), lambda i: (i, 0)),
            pl.BlockSpec((f_in, hidden), lambda i: (0, 0)),
            pl.BlockSpec((1, hidden), lambda i: (0, 0)),
            pl.BlockSpec((hidden, f_out), lambda i: (0, 0)),
            pl.BlockSpec((1, f_out), lambda i: (0, 0)),
        ],
        # Natural width (tm, 10): block last dim equals full array dim (legal);
        # masked vst is fine — the kernel is HBM-bound, not store-slot bound.
        out_specs=pl.BlockSpec((tm, f_out), lambda i: (i, 0)),
        compiler_params=pltpu.CompilerParams(
            dimension_semantics=("parallel",)),   # shard row tiles across TCs
    )(x, w1, b1, w2, b2)


def toy_mlp_forward(x, w1, b1, w2, b2, *, tm=2048, single_block_rows=4096):
    """Pallas wrapper.  Up to `single_block_rows` rows the whole problem fits
    comfortably in VMEM (x/out lane-padded blocks are M*128*4 B each, weights
    <20 KiB), so take the no-grid path; larger row counts take the gridded,
    TC-parallel path."""
    if x.shape[0] <= single_block_rows:
        return _mlp_single_block(x, w1, b1, w2, b2)
    return _mlp_gridded(x, w1, b1, w2, b2, tm=tm)


class PythonDDP:
    """JAX/Pallas analogue of the PyTorch PythonDDP wrapper.

    Forward delegates to the wrapped module (the Pallas fused MLP).  The
    gradient bucketing + all_reduce path has no forward-pass compute and is
    stubbed.
    """

    def __init__(self, params, world_size=1, async_reduction=True,
                 buffer_size=2 ** 22):
        self.params = params  # dict: w1, b1, w2, b2 (pre-transposed layout)
        self.world_size = world_size
        self.async_reduction = async_reduction
        max_numel = max(int(p.size) for p in params.values())
        assert buffer_size > max_numel, (
            f"buffer_size: {buffer_size} should be larger than largest "
            f"param: {max_numel}")
        # TODO(synk): param bucketing + per-param grad hooks + dist.all_reduce
        # are backward-pass / multi-host distribution machinery with no forward
        # compute; a Pallas port would use pltpu.make_async_remote_copy + sems.

    def __call__(self, x):
        p = self.params
        return toy_mlp_forward(x, p["w1"], p["b1"], p["w2"], p["b2"])

    def all_reduce_grads(self, grads=None):
        # TODO(synk): cross-device grad averaging (dist.all_reduce) not part of
        # the forward pass; would use pltpu.make_async_remote_copy + semaphores.
        return grads


def _init_params(key, f_in=10, hidden=32, f_out=10, dtype=jnp.float32):
    """Deterministic Kaiming-uniform-like init (matches nn.Linear bounds)."""
    k1, k2, k3, k4 = jax.random.split(key, 4)
    bound1 = 1.0 / jnp.sqrt(f_in)
    bound2 = 1.0 / jnp.sqrt(hidden)
    return {
        # stored as (in, out) = transpose of PyTorch's (out, in)
        "w1": jax.random.uniform(k1, (f_in, hidden), dtype, -bound1, bound1),
        "b1": jax.random.uniform(k2, (1, hidden), dtype, -bound1, bound1),
        "w2": jax.random.uniform(k3, (hidden, f_out), dtype, -bound2, bound2),
        "b2": jax.random.uniform(k4, (1, f_out), dtype, -bound2, bound2),
    }


def _ref_forward(x, p):
    return jnp.maximum(x @ p["w1"] + p["b1"], 0.0) @ p["w2"] + p["b2"]


if __name__ == "__main__":
    key = jax.random.PRNGKey(0)
    pkey, xkey, bkey = jax.random.split(key, 3)

    # Shapes from the PythonDDP docstring example: inputs/labels are (20, 10).
    B, F_IN, HIDDEN, F_OUT = 20, 10, 32, 10
    params = _init_params(pkey, F_IN, HIDDEN, F_OUT)
    ddp_model = PythonDDP(params, world_size=1, async_reduction=True)

    # (a) single DDP micro-step: (20, 10) — no-grid whole-array VMEM path.
    x = jax.random.normal(xkey, (B, F_IN), jnp.float32)
    out = jax.block_until_ready(ddp_model(x))
    ref = _ref_forward(x, params)
    assert out.shape == (B, F_OUT)
    assert jnp.allclose(out, ref, atol=1e-5, rtol=1e-5)

    # (b) many DDP micro-steps stacked & flattened: (64 * 20, 10) = 1280 rows.
    #     Still below the 4096-row cutoff -> single-block path (zero pipeline
    #     steps, no padding, no post-slice).
    N_STEPS = 64
    xb = jax.random.normal(bkey, (N_STEPS * B, F_IN), jnp.float32)
    outb = jax.block_until_ready(ddp_model(xb))
    refb = _ref_forward(xb, params)
    assert outb.shape == (N_STEPS * B, F_OUT)
    assert jnp.allclose(outb, refb, atol=1e-4, rtol=1e-4)

    # (c) exercise the gridded path explicitly (small tm so the 1280 rows form
    #     an even, TC-balanced number of tiles with a partial last block):
    #     cdiv(1280, 256)=5 -> 6 tiles, tm=216, last block partial (masked).
    p = params
    outg = jax.block_until_ready(
        _mlp_gridded(xb, p["w1"], p["b1"], p["w2"], p["b2"], tm=256))
    assert outg.shape == (N_STEPS * B, F_OUT)
    assert jnp.allclose(outg, refb, atol=1e-4, rtol=1e-4)

    print("KERNEL_OK")
</pallas_src>

<mosaic_0001>
module attributes {stable_mosaic.version = 11 : i64} {
  func.func @_toy_mlp_kernel(%arg0: memref<20x10xf32, #tpu.memory_space<vmem>>, %arg1: memref<10x32xf32, #tpu.memory_space<vmem>>, %arg2: memref<1x32xf32, #tpu.memory_space<vmem>>, %arg3: memref<32x10xf32, #tpu.memory_space<vmem>>, %arg4: memref<1x10xf32, #tpu.memory_space<vmem>>, %arg5: memref<20x10xf32, #tpu.memory_space<vmem>>) attributes {dimension_semantics = [], scalar_prefetch = 0 : i64, scratch_operands = 0 : i64, tpu.core_type = #tpu.core_type<tc>} {
    %c0 = arith.constant 0 : index
    %c0_0 = arith.constant 0 : index
    %0 = vector.load %arg0[%c0, %c0_0] : memref<20x10xf32, #tpu.memory_space<vmem>>, vector<20x10xf32>
    %c0_1 = arith.constant 0 : index
    %c0_2 = arith.constant 0 : index
    %1 = vector.load %arg1[%c0_1, %c0_2] : memref<10x32xf32, #tpu.memory_space<vmem>>, vector<10x32xf32>
    %cst = arith.constant dense<0.000000e+00> : vector<20x32xf32>
    %2 = tpu.matmul %0, %1, %cst {dimension_numbers = #tpu.dot_dimension_numbers<[1], [0], [0], [1], [0, 0, 1, 1], [], []>} : vector<20x10xf32>, vector<10x32xf32>, vector<20x32xf32> -> vector<20x32xf32>
    %c0_3 = arith.constant 0 : index
    %c0_4 = arith.constant 0 : index
    %3 = vector.load %arg2[%c0_3, %c0_4] : memref<1x32xf32, #tpu.memory_space<vmem>>, vector<1x32xf32>
    %4 = vector.broadcast %3 : vector<1x32xf32> to vector<20x32xf32>
    %5 = arith.addf %2, %4 : vector<20x32xf32>
    %cst_5 = arith.constant 0.000000e+00 : f32
    %6 = vector.broadcast %cst_5 : f32 to vector<20x32xf32>
    %7 = arith.maximumf %5, %6 : vector<20x32xf32>
    %c0_6 = arith.constant 0 : index
    %c0_7 = arith.constant 0 : index
    %8 = vector.load %arg3[%c0_6, %c0_7] : memref<32x10xf32, #tpu.memory_space<vmem>>, vector<32x10xf32>
    %cst_8 = arith.constant dense<0.000000e+00> : vector<20x10xf32>
    %9 = tpu.matmul %7, %8, %cst_8 {dimension_numbers = #tpu.dot_dimension_numbers<[1], [0], [0], [1], [0, 0, 1, 1], [], []>} : vector<20x32xf32>, vector<32x10xf32>, vector<20x10xf32> -> vector<20x10xf32>
    %c0_9 = arith.constant 0 : index
    %c0_10 = arith.constant 0 : index
    %10 = vector.load %arg4[%c0_9, %c0_10] : memref<1x10xf32, #tpu.memory_space<vmem>>, vector<1x10xf32>
    %11 = vector.broadcast %10 : vector<1x10xf32> to vector<20x10xf32>
    %12 = arith.addf %9, %11 : vector<20x10xf32>
    %c0_11 = arith.constant 0 : index
    %c0_12 = arith.constant 0 : index
    %13 = vector.load %arg5[%c0_11, %c0_12] : memref<20x10xf32, #tpu.memory_space<vmem>>, vector<20x10xf32>
    tpu.vector_store %arg5[%c0_11, %c0_12], %12 {strides = array<i32>} : memref<20x10xf32, #tpu.memory_space<vmem>>, vector<20x10xf32>,
    return
  }
}

</mosaic_0001>

<llo_original>
// kernel: tpu_custom_call.1
$region0: #{tpu_custom_call.1}
  #allocation0 [shape = 'u32[]', space=smem, size = 0x4, offset = 0x4, fixed_abs, tag = 'smem constant byte address 0x4 - core index']
  #allocation1 [shape = 'u32[72,128]{1,0:T(1,128)}', space=vmem, size = 0x9000, scoped, tag = 'internal scratch']
  %s0 = inlined_call_operand.vmem [shape: f32[20,10], index: 0, kind: input, shape index: {}]
  %s1 = inlined_call_operand.vmem [shape: f32[10,32], index: 1, kind: input, shape index: {}]
  %s2 = inlined_call_operand.vmem [shape: f32[1,32], index: 2, kind: input, shape index: {}]
  %s3 = inlined_call_operand.vmem [shape: f32[32,10], index: 3, kind: input, shape index: {}]
  %s4 = inlined_call_operand.vmem [shape: f32[1,10], index: 4, kind: input, shape index: {}]
  %s5 = inlined_call_operand.vmem [shape: f32[20,10], index: 5, kind: output, shape index: {}]
  %s6 = sld [smem:[#allocation0]]
  $region30: #{tpu_custom_call.1} parent=0
    _
  %s8 = ssub.s32 1, %s6
  %s9 = scalar_select 0, %s8, %s6
  // Predicated region
  $region2: #{tpu_custom_call.1} parent=0 // pred_check
    _
  $region3: #{tpu_custom_call.1} parent=0 // pred_check_branch
    %11 = sbr.rel (0) target = $region5
  $region4: #{tpu_custom_call.1} parent=0 // pred_region
    _
  $region5: #{tpu_custom_call.1} parent=0 // pred_fallthru
    _
  // Predicated region
  $region6: #{tpu_custom_call.1} parent=0 // pred_check
    _
  $region7: #{tpu_custom_call.1} parent=0 // pred_check_branch
    %13 = sbr.rel (0) target = $region9
  $region8: #{tpu_custom_call.1} parent=0 // pred_region
    _
  $region9: #{tpu_custom_call.1} parent=0 // pred_fallthru
    _
  // Predicated region
  $region10: #{tpu_custom_call.1} parent=0 // pred_check
    _
  $region11: #{tpu_custom_call.1} parent=0 // pred_check_branch
    %15 = sbr.rel (0) target = $region13
  $region12: #{tpu_custom_call.1} parent=0 // pred_region
    _
  $region13: #{tpu_custom_call.1} parent=0 // pred_fallthru
    _
  // Predicated region
  $region14: #{tpu_custom_call.1} parent=0 // pred_check
    _
  $region15: #{tpu_custom_call.1} parent=0 // pred_check_branch
    %17 = sbr.rel (0) target = $region17
  $region16: #{tpu_custom_call.1} parent=0 // pred_region
    _
  $region17: #{tpu_custom_call.1} parent=0 // pred_fallthru
    _
  // Predicated region
  $region18: #{tpu_custom_call.1} parent=0 // pred_check
    _
  $region19: #{tpu_custom_call.1} parent=0 // pred_check_branch
    %19 = sbr.rel (0) target = $region21
  $region20: #{tpu_custom_call.1} parent=0 // pred_region
    _
  $region21: #{tpu_custom_call.1} parent=0 // pred_fallthru
    _
  %v20 = vld [vmem:[%s0] sm:$0xff]
  %v21 = vld [vmem:[%s0 + $0x8] sm:$0xff]
  %v22 = vld [vmem:[%s0 + $0x10] sm:$0xf]
  %v23 = vld [vmem:[%s1] sm:$0xff]
  %v24 = vld [vmem:[%s1 + $0x8] sm:$0x3]
  %v25 = vld [vmem:[%s2] sm:$0x1]
  %v27 = vperm.slane %v25, 0
  %vm29 = vcmask 80896
  %v31 = vsel %vm29, %v20, 0
  %v34 = vsel %vm29, %v21, 0
  %v37 = vsel %vm29, %v22, 0
  %vm39 = vcmask 1041408
  %v41 = vsel %vm39, %v24, 0
  %43 = vmatpush.msra.mxu0 0.0
  %44 = vmatpush.msra.mxu0 0.0
  %45 = vmatpush.msra.mxu0 0.0
  %46 = vmatpush.msra.mxu0 0.0
  %47 = vmatpush.msra.mxu0 0.0
  %48 = vmatpush.msra.mxu0 0.0
  %49 = vmatpush.msra.mxu0 0.0
  %50 = vmatpush.msra.mxu0 0.0
  %51 = vmatpush.msra.mxu0 0.0
  %52 = vmatpush.msra.mxu0 0.0
  %53 = vmatpush.msra.mxu0 0.0
  %54 = vmatpush.msra.mxu0 0.0
  %55 = vmatpush.msra.mxu0 0.0
  %56 = vmatpush.msra.mxu0 0.0
  %57 = vmatpush.msra.mxu0 %v41
  %58 = vmatpush.msra.mxu0 %v23
  %59 = vmatmul.f32.gmra.mxu0 %v31
  %v60 = vpop.f32.mrf.mxu0
  %v61 = vadd.f32 %v27, %v60
  %62 = vmatmul.f32.gmra.mxu0 %v34
  %v63 = vpop.f32.mrf.mxu0
  %v64 = vadd.f32 %v27, %v63
  %65 = vmatmul.f32.gmra.mxu0 %v37
  %v66 = vpop.f32.mrf.mxu0
  %v67 = vadd.f32 %v27, %v66
  %68 = vdwg.mxu0
  %v69 = vmax.f32 %v61, 0.0
  %v70 = vmax.f32 %v64, 0.0
  %v71 = vmax.f32 %v67, 0.0
  %v72 = vld [vmem:[%s3] sm:$0xff]
  %v73 = vld [vmem:[%s3 + $0x8] sm:$0xff]
  %v74 = vld [vmem:[%s3 + $0x10] sm:$0xff]
  %v75 = vld [vmem:[%s3 + $0x18] sm:$0xff]
  %v76 = vld [vmem:[%s4] sm:$0x1]
  %v78 = vperm.slane %v76, 0
  %vm80 = vcmask 261120
  %v82 = vsel %vm80, %v69, 0
  %v85 = vsel %vm80, %v70, 0
  %v88 = vsel %vm80, %v71, 0
  %90 = vmatpush.msra.mxu0 0.0
  %91 = vmatpush.msra.mxu0 0.0
  %92 = vmatpush.msra.mxu0 0.0
  %93 = vmatpush.msra.mxu0 0.0
  %94 = vmatpush.msra.mxu0 0.0
  %95 = vmatpush.msra.mxu0 0.0
  %96 = vmatpush.msra.mxu0 0.0
  %97 = vmatpush.msra.mxu0 0.0
  %98 = vmatpush.msra.mxu0 0.0
  %99 = vmatpush.msra.mxu0 0.0
  %100 = vmatpush.msra.mxu0 0.0
  %101 = vmatpush.msra.mxu0 0.0
  %102 = vmatpush.msra.mxu0 %v75
  %103 = vmatpush.msra.mxu0 %v74
  %104 = vmatpush.msra.mxu0 %v73
  %105 = vmatpush.msra.mxu0 %v72
  %106 = vmatmul.f32.gmra.mxu0 %v82
  %v107 = vpop.f32.mrf.mxu0
  %v108 = vadd.f32 %v78, %v107
  %109 = vmatmul.f32.gmra.mxu0 %v85
  %v110 = vpop.f32.mrf.mxu0
  %v111 = vadd.f32 %v78, %v110
  %112 = vmatmul.f32.gmra.mxu0 %v88
  %v113 = vpop.f32.mrf.mxu0
  %v114 = vadd.f32 %v78, %v113
  %115 = vdwg.mxu0
  %116 = vst.msk [vmem:[%s5] sm:$0xff] %vm29, %v108
  %117 = vst.msk [vmem:[%s5 + $0x8] sm:$0xff] %vm29, %v111
  %vm118 = vcmask 76800
  %119 = vst.msk [vmem:[%s5 + $0x10] sm:$0xf] %vm118, %v114
  // Predicated region
  $region22: #{tpu_custom_call.1} parent=0 // pred_check
    _
  $region23: #{tpu_custom_call.1} parent=0 // pred_check_branch
    %121 = sbr.rel (0) target = $region25
  $region24: #{tpu_custom_call.1} parent=0 // pred_region
    _
  $region25: #{tpu_custom_call.1} parent=0 // pred_fallthru
    _
  // Predicated region
  $region26: #{tpu_custom_call.1} parent=0 // pred_check
    _
  $region27: #{tpu_custom_call.1} parent=0 // pred_check_branch
    %123 = sbr.rel (0) target = $region29
  $region28: #{tpu_custom_call.1} parent=0 // pred_region
    _
  $region29: #{tpu_custom_call.1} parent=0 // pred_fallthru
    _

</llo_original>
